<compile_context>
chip_gen: v7x
topology: tpu7x:2x2x1
jax: 0.10.0
libtpu: 0.0.40
codegen_flags: <defaults>
</compile_context>

<pallas_src>
import functools

import jax
import jax.numpy as jnp
from jax.experimental import pallas as pl
from jax.experimental.pallas import tpu as pltpu

_MIB = 1024 * 1024


def _round_up(x, m):
    return (x + m - 1) // m * m


def _vmem_capacity_bytes():
    try:
        info = pltpu.get_tpu_info()
        return int(getattr(info, "vmem_capacity_bytes", 128 * _MIB))
    except Exception:
        return 128 * _MIB


def _pick_v_chunk(V):
    """V-chunk for the in-kernel online-softmax loop (V itself if small)."""
    if V <= 4096:
        return V
    for cand in (8192, 4096, 2048, 1024, 512):
        if V % cand == 0:
            return cand
    # TODO(synk): mask a ragged tail V-chunk; for now fall back to one pass.
    return V


def _label_smoothing_kernel(logits_ref, tgt_ref, valid_ref, loss_ref, *,
                            confidence, smoothing_value, ignore_index,
                            v_chunk):
    """One tile of rows: closed-form label-smoothed cross entropy.

    logits_ref: (R, V) float   — model logits (any float dtype; cast to f32)
    tgt_ref:    (R, 1) int32   — target class ids
    valid_ref:  (R, 1) float32 — 1.0 if t < label_length[b] else 0.0
    loss_ref:   (R, 1) float32 — per-row loss (masked)
    """
    tgt = tgt_ref[...]                                    # (R, 1) int32
    valid = valid_ref[...]                                # (R, 1) f32
    R, V = logits_ref.shape
    n_chunks = V // v_chunk

    c = jnp.float32(confidence)
    s = jnp.float32(smoothing_value)

    if n_chunks == 1:
        # Single pass over the whole vocab.
        x = logits_ref[...].astype(jnp.float32)           # (R, V)
        col = jax.lax.broadcasted_iota(jnp.int32, (1, V), 1)
        m = jnp.max(x, axis=-1, keepdims=True)            # (R, 1)
        sum_ex = jnp.sum(jnp.exp(x - m), axis=-1, keepdims=True)
        # fused weighted reduction: s*sum(x) + (c-s)*x[tgt]
        wsum = jnp.sum(jnp.where(col == tgt, c, s) * x, axis=-1, keepdims=True)
    else:
        # Online softmax over V chunks: only one (R, Vc) f32 temp is live.
        col = jax.lax.broadcasted_iota(jnp.int32, (1, v_chunk), 1)

        def body(j, carry):
            m, sum_ex, wsum = carry
            off = pl.multiple_of(j * v_chunk, v_chunk)
            xc = logits_ref[:, pl.ds(off, v_chunk)].astype(jnp.float32)
            m_new = jnp.maximum(m, jnp.max(xc, axis=-1, keepdims=True))
            sum_ex = (sum_ex * jnp.exp(m - m_new)
                      + jnp.sum(jnp.exp(xc - m_new), axis=-1, keepdims=True))
            tgt_loc = tgt - j * v_chunk                   # (R, 1)
            wsum = wsum + jnp.sum(jnp.where(col == tgt_loc, c, s) * xc,
                                  axis=-1, keepdims=True)
            return m_new, sum_ex, wsum

        init = (jnp.full((R, 1), -jnp.inf, jnp.float32),
                jnp.zeros((R, 1), jnp.float32),
                jnp.zeros((R, 1), jnp.float32))
        m, sum_ex, wsum = jax.lax.fori_loop(0, n_chunks, body, init)

    lse = jnp.log(sum_ex) + m                             # (R, 1)

    # Static column read of the ignore_index logit (adds back the s weight
    # that wsum spuriously applied at the ignore column).
    x_ign = logits_ref[:, ignore_index:ignore_index + 1].astype(jnp.float32)

    # coefficient of lse is s*(V-2) + c == 1.0 analytically.
    loss = lse - wsum + s * x_ign                          # (R, 1)

    # masked_fill: rows whose target is ignore_index contribute zero,
    # then apply the sequence-length mask (texar mask_sequences).
    not_ign = (tgt != ignore_index).astype(jnp.float32)
    loss_ref[...] = loss * not_ign * valid


def label_smoothing_loss(output, target, label_lengths, *,
                         label_confidence, tgt_vocab_size, ignore_index=0,
                         tile_rows=None):
    """output: (B, T, V) float; target: (B, T) int; label_lengths: (B,) int.

    Returns per-position loss of shape (B, T), zero for t >= label_lengths[b]
    (matching the PyTorch module: no batch/time reduction).
    """
    B, T, V = output.shape
    assert V == tgt_vocab_size
    assert tgt_vocab_size > 2 and 0 <= ignore_index < V
    N = B * T

    label_smoothing = 1.0 - label_confidence
    assert 0.0 < label_smoothing <= 1.0
    smoothing_value = label_smoothing / (tgt_vocab_size - 2)

    itemsize = jnp.dtype(output.dtype).itemsize
    sublane = max(8, 32 // itemsize)         # 8 f32, 16 bf16, 32 int8/fp8
    v_chunk = _pick_v_chunk(V)

    # ---- VMEM budgets: large on 128 MiB chips (v5e/v6e), capped on v7x ----
    cap = _vmem_capacity_bytes()
    if cap >= 96 * _MIB:                      # v5e / v6e (128 MiB physical)
        vmem_limit, budget = 96 * _MIB, 72 * _MIB
    else:                                     # v7x (64 MiB per TC)
        vmem_limit, budget = 48 * _MIB, 36 * _MIB

    # ---- tile sizing: biggest row tile that comfortably fits the budget ----
    if tile_rows is None:
        # double-buffered input tile + live f32 temporaries over one V-chunk
        bytes_per_row = 2 * V * itemsize + 6 * v_chunk * 4 + 64
        tile_rows = max(sublane, min(4096, budget // bytes_per_row))
    tile_rows = max(sublane, (int(tile_rows) // sublane) * sublane)
    tile_rows = min(tile_rows, _round_up(N, sublane))

    # glue: flatten + validity mask.  NO padding of the (N, V) logits: the
    # cdiv grid lets Pallas handle the partial tail block (garbage reads,
    # dropped stores — every row is independent).
    logits = output.reshape(N, V)             # keep HBM dtype (bf16 ok)
    tgt = target.reshape(N, 1).astype(jnp.int32)
    valid = (jnp.arange(T, dtype=jnp.int32)[None, :]
             < label_lengths.astype(jnp.int32)[:, None])
    valid = valid.astype(jnp.float32).reshape(N, 1)

    kernel = functools.partial(
        _label_smoothing_kernel,
        confidence=float(label_confidence),
        smoothing_value=float(smoothing_value),
        ignore_index=int(ignore_index),
        v_chunk=int(v_chunk),
    )

    loss_flat = pl.pallas_call(
        kernel,
        out_shape=jax.ShapeDtypeStruct((N, 1), jnp.float32),
        grid=(pl.cdiv(N, tile_rows),),
        in_specs=[
            pl.BlockSpec((tile_rows, V), lambda i: (i, 0)),   # logits tile
            pl.BlockSpec((tile_rows, 1), lambda i: (i, 0)),   # targets
            pl.BlockSpec((tile_rows, 1), lambda i: (i, 0)),   # valid mask
        ],
        out_specs=pl.BlockSpec((tile_rows, 1), lambda i: (i, 0)),
        compiler_params=pltpu.CompilerParams(
            dimension_semantics=("parallel",),
            vmem_limit_bytes=vmem_limit),
    )(logits, tgt, valid)

    return loss_flat.reshape(B, T)


def _reference_loss(output, target, label_lengths, *,
                    label_confidence, tgt_vocab_size, ignore_index=0):
    """Pure-JAX reference mirroring the PyTorch module semantics."""
    smoothing_value = (1.0 - label_confidence) / (tgt_vocab_size - 2)
    logp = jax.nn.log_softmax(output.astype(jnp.float32), axis=-1)
    col = jnp.arange(tgt_vocab_size)[None, None, :]
    lbl = jnp.full(output.shape, smoothing_value, dtype=jnp.float32)
    lbl = jnp.where(col == ignore_index, 0.0, lbl)
    lbl = jnp.where(col == target[..., None], label_confidence, lbl)
    lbl = jnp.where((target == ignore_index)[..., None], 0.0, lbl)
    loss = -jnp.sum(lbl * logp, axis=-1)
    mask = (jnp.arange(output.shape[1])[None, :]
            < label_lengths[:, None]).astype(loss.dtype)
    return loss * mask


def _run_case(key, B, T, V, confidence, ignore_index, tile_rows=None,
              atol=1e-5, rtol=1e-5):
    k_out, k_tgt = jax.random.split(key, 2)
    output = jax.random.normal(k_out, (B, T, V), dtype=jnp.float32)
    target = jax.random.randint(k_tgt, (B, T), 0, V, dtype=jnp.int32)
    # force a couple of ignore_index targets to exercise the masked_fill path
    target = target.at[0, T - 2].set(ignore_index)
    target = target.at[B - 1, 1].set(ignore_index)
    label_lengths = jnp.minimum(
        jnp.arange(1, B + 1, dtype=jnp.int32) * (T // 2 + 1), T)

    loss = label_smoothing_loss(
        output, target, label_lengths,
        label_confidence=confidence, tgt_vocab_size=V,
        ignore_index=ignore_index, tile_rows=tile_rows)
    loss = jax.block_until_ready(loss)

    ref = _reference_loss(
        output, target, label_lengths,
        label_confidence=confidence, tgt_vocab_size=V,
        ignore_index=ignore_index)

    assert loss.shape == (B, T)
    assert jnp.allclose(loss, ref, atol=atol, rtol=rtol), (loss, ref)


if __name__ == "__main__":
    confidence = 0.9
    ignore_index = 0
    key = jax.random.PRNGKey(0)
    k1, k2, k3 = jax.random.split(key, 3)

    # 1) main small case: single tile, single V pass
    _run_case(k1, B=2, T=8, V=32, confidence=confidence,
              ignore_index=ignore_index)
    # 2) N not a tile multiple: exercises the padding-free partial tail block
    _run_case(k2, B=3, T=5, V=32, confidence=confidence,
              ignore_index=ignore_index, tile_rows=8)
    # 3) large-ish vocab: exercises the in-kernel V-chunk online-softmax loop
    _run_case(k3, B=2, T=8, V=5120, confidence=confidence,
              ignore_index=ignore_index, atol=1e-3, rtol=1e-4)

    print("KERNEL_OK")
</pallas_src>

<mosaic_0001>
module attributes {stable_mosaic.version = 11 : i64} {
  func.func @_label_smoothing_kernel(%arg0: i32, %arg1: memref<16x32xf32, #tpu.memory_space<vmem>>, %arg2: memref<16x1xi32, #tpu.memory_space<vmem>>, %arg3: memref<16x1xf32, #tpu.memory_space<vmem>>, %arg4: memref<16x1xf32, #tpu.memory_space<vmem>>) attributes {dimension_semantics = [#tpu.dimension_semantics<parallel>], iteration_bounds = array<i64: 1>, scalar_prefetch = 0 : i64, scratch_operands = 0 : i64, tpu.core_type = #tpu.core_type<tc>, window_params = [{transform_indices = @transform_0, window_bounds = array<i64: 16, 32>}, {transform_indices = @transform_1, window_bounds = array<i64: 16, 1>}, {transform_indices = @transform_2, window_bounds = array<i64: 16, 1>}, {transform_indices = @transform_3, window_bounds = array<i64: 16, 1>}]} {
    %c0 = arith.constant 0 : index
    %c0_0 = arith.constant 0 : index
    %0 = vector.load %arg2[%c0, %c0_0] : memref<16x1xi32, #tpu.memory_space<vmem>>, vector<16x1xi32>
    %c0_1 = arith.constant 0 : index
    %c0_2 = arith.constant 0 : index
    %1 = vector.load %arg3[%c0_1, %c0_2] : memref<16x1xf32, #tpu.memory_space<vmem>>, vector<16x1xf32>
    %c0_3 = arith.constant 0 : index
    %c0_4 = arith.constant 0 : index
    %2 = vector.load %arg1[%c0_3, %c0_4] : memref<16x32xf32, #tpu.memory_space<vmem>>, vector<16x32xf32>
    %3 = tpu.iota {dimensions = array<i32: 1>} : vector<1x32xi32>
    %cst = arith.constant dense<0xFF800000> : vector<16xf32>
    %4 = vector.multi_reduction <maximumf>, %2, %cst [1] : vector<16x32xf32> to vector<16xf32>
    %5 = vector.shape_cast %4 : vector<16xf32> to vector<16x1xf32>
    %6 = vector.broadcast %5 : vector<16x1xf32> to vector<16x32xf32>
    %7 = arith.subf %2, %6 : vector<16x32xf32>
    %8 = math.exp %7 : vector<16x32xf32>
    %cst_5 = arith.constant dense<0.000000e+00> : vector<16xf32>
    %9 = vector.multi_reduction <add>, %8, %cst_5 [1] : vector<16x32xf32> to vector<16xf32>
    %10 = vector.shape_cast %9 : vector<16xf32> to vector<16x1xf32>
    %11 = vector.broadcast %3 : vector<1x32xi32> to vector<16x32xi32>
    %12 = vector.broadcast %0 : vector<16x1xi32> to vector<16x32xi32>
    %13 = arith.cmpi eq, %11, %12 : vector<16x32xi32>
    %cst_6 = arith.constant 0.899999976 : f32
    %cst_7 = arith.constant 0.00333333341 : f32
    %14 = vector.broadcast %cst_6 : f32 to vector<16x32xf32>
    %15 = vector.broadcast %cst_7 : f32 to vector<16x32xf32>
    %16 = arith.select %13, %14, %15 : vector<16x32xi1>, vector<16x32xf32>
    %17 = arith.mulf %16, %2 : vector<16x32xf32>
    %cst_8 = arith.constant dense<0.000000e+00> : vector<16xf32>
    %18 = vector.multi_reduction <add>, %17, %cst_8 [1] : vector<16x32xf32> to vector<16xf32>
    %19 = vector.shape_cast %18 : vector<16xf32> to vector<16x1xf32>
    %20 = math.log %10 : vector<16x1xf32>
    %21 = arith.addf %20, %5 : vector<16x1xf32>
    %c0_9 = arith.constant 0 : index
    %c0_10 = arith.constant 0 : index
    %22 = vector.load %arg1[%c0_9, %c0_10] : memref<16x32xf32, #tpu.memory_space<vmem>>, vector<16x1xf32>
    %23 = arith.subf %21, %19 : vector<16x1xf32>
    %cst_11 = arith.constant 0.00333333341 : f32
    %24 = vector.broadcast %cst_11 : f32 to vector<16x1xf32>
    %25 = arith.mulf %24, %22 : vector<16x1xf32>
    %26 = arith.addf %23, %25 : vector<16x1xf32>
    %c0_i32 = arith.constant 0 : i32
    %27 = vector.broadcast %c0_i32 : i32 to vector<16x1xi32>
    %28 = arith.cmpi ne, %0, %27 : vector<16x1xi32>
    %29 = arith.extui %28 : vector<16x1xi1> to vector<16x1xi32>
    %30 = arith.sitofp %29 : vector<16x1xi32> to vector<16x1xf32>
    %31 = arith.mulf %26, %30 : vector<16x1xf32>
    %32 = arith.mulf %31, %1 : vector<16x1xf32>
    %c0_12 = arith.constant 0 : index
    %c0_13 = arith.constant 0 : index
    %33 = vector.load %arg4[%c0_12, %c0_13] : memref<16x1xf32, #tpu.memory_space<vmem>>, vector<16x1xf32>
    tpu.vector_store %arg4[%c0_12, %c0_13], %32 {strides = array<i32>} : memref<16x1xf32, #tpu.memory_space<vmem>>, vector<16x1xf32>,
    return
  }
  func.func @transform_0(%arg0: i32) -> (i32, i32) {
    %c0_i32 = arith.constant 0 : i32
    %c0_i32_0 = arith.constant 0 : i32
    return %arg0, %c0_i32 : i32, i32
  }
  func.func @transform_1(%arg0: i32) -> (i32, i32) {
    %c0_i32 = arith.constant 0 : i32
    %c0_i32_0 = arith.constant 0 : i32
    return %arg0, %c0_i32 : i32, i32
  }
  func.func @transform_2(%arg0: i32) -> (i32, i32) {
    %c0_i32 = arith.constant 0 : i32
    %c0_i32_0 = arith.constant 0 : i32
    return %arg0, %c0_i32 : i32, i32
  }
  func.func @transform_3(%arg0: i32) -> (i32, i32) {
    %c0_i32 = arith.constant 0 : i32
    %c0_i32_0 = arith.constant 0 : i32
    return %arg0, %c0_i32 : i32, i32
  }
}

</mosaic_0001>

<llo_original>
// kernel: tpu_custom_call.1
$region0: #{tpu_custom_call.1}
  #allocation0 [shape = 'u32[]', space=smem, size = 0x4, offset = 0x4, fixed_abs, tag = 'smem constant byte address 0x4 - core index']
  #allocation1 [shape = 'u32[144,128]{1,0:T(1,128)}', space=vmem, size = 0x12000, scoped, tag = 'internal scratch']
  %s0 = inlined_call_operand.hbm [shape: f32[16,32], index: 0, kind: input, shape index: {}]
  %s1 = inlined_call_operand.hbm [shape: s32[16,1], index: 1, kind: input, shape index: {}]
  %s2 = inlined_call_operand.hbm [shape: f32[16,1], index: 2, kind: input, shape index: {}]
  %s3 = inlined_call_operand.hbm [shape: f32[16,1], index: 3, kind: output, shape index: {}]
  %s4 = sld [smem:[#allocation0]]
  $region34: #{tpu_custom_call.1} parent=0
    _
  %s6 = ssub.s32 1, %s4
  %s7 = scalar_select 0, %s6, %s4
  $region1: #{tpu_custom_call.1} parent=0
    #allocation2 [shape = 'u8[8192]{0}', space=vmem, size = 0x2000, scoped, tag = 'input window, operand 0, single buffered']
    #allocation3 [shape = 's32[1]{0}', space=sflag, size = 0x4, scoped, tag = 'scoped memory for tpu_custom_call.1']
    #allocation4 [shape = 's32[1]{0}', space=sflag, size = 0x4, scoped, tag = 'scoped memory for tpu_custom_call.1']
    #allocation5 [shape = 'u8[8192]{0}', space=vmem, size = 0x2000, scoped, tag = 'input window, operand 1, single buffered']
    #allocation6 [shape = 's32[1]{0}', space=sflag, size = 0x4, scoped, tag = 'scoped memory for tpu_custom_call.1']
    #allocation7 [shape = 'u8[8192]{0}', space=vmem, size = 0x2000, scoped, tag = 'input window, operand 2, single buffered']
    #allocation8 [shape = 'u8[8192]{0}', space=vmem, size = 0x2000, scoped, tag = 'output window, operand 0, single buffered']
    %8 = vsyncpa [#allocation3], 0
    %9 = vsyncpa [#allocation6], 0
    %10 = vsyncpa [#allocation4], 0
    // Predicated region
    $region2: #{tpu_custom_call.1} parent=1 // pred_check
      _
    $region3: #{tpu_custom_call.1} parent=1 // pred_check_branch
      %12 = sbr.rel (0) target = $region5
    $region4: #{tpu_custom_call.1} parent=1 // pred_region
      %s14 = ssub.s32 256, 256
      %15 = vsyncadd [#allocation3], %s14
      %s16 = sshll.u32 [#allocation2], 4
      %s17 = int_to_ptr.vmem [resolvable:$true] %s16
      %22 = dma.hbm_to_vmem [thread:$0]  %s0, 256, %s17, [#allocation3], 128, 128, 8
    $region5: #{tpu_custom_call.1} parent=1 // pred_fallthru
      _
    // Predicated region
    $region6: #{tpu_custom_call.1} parent=1 // pred_check
      _
    $region7: #{tpu_custom_call.1} parent=1 // pred_check_branch
      %24 = sbr.rel (0) target = $region9
    $region8: #{tpu_custom_call.1} parent=1 // pred_region
      %s26 = ssub.s32 256, 256
      %27 = vsyncadd [#allocation6], %s26
      %s28 = sshll.u32 [#allocation5], 4
      %s29 = int_to_ptr.vmem [resolvable:$true] %s28
      %34 = dma.hbm_to_vmem [thread:$0]  %s1, 256, %s29, [#allocation6], 128, 128, 8
    $region9: #{tpu_custom_call.1} parent=1 // pred_fallthru
      _
    // Predicated region
    $region10: #{tpu_custom_call.1} parent=1 // pred_check
      _
    $region11: #{tpu_custom_call.1} parent=1 // pred_check_branch
      %36 = sbr.rel (0) target = $region13
    $region12: #{tpu_custom_call.1} parent=1 // pred_region
      %s38 = ssub.s32 256, 256
      %39 = vsyncadd [#allocation6], %s38
      %s40 = sshll.u32 [#allocation7], 4
      %s41 = int_to_ptr.vmem [resolvable:$true] %s40
      %46 = dma.hbm_to_vmem [thread:$0]  %s2, 256, %s41, [#allocation6], 128, 128, 8
    $region13: #{tpu_custom_call.1} parent=1 // pred_fallthru
      _
    // Predicated region
    $region14: #{tpu_custom_call.1} parent=1 // pred_check
      _
    $region15: #{tpu_custom_call.1} parent=1 // pred_check_branch
      %48 = sbr.rel (0) target = $region17
    $region16: #{tpu_custom_call.1} parent=1 // pred_region
      %49 = dma.done [#allocation3], 256
    $region17: #{tpu_custom_call.1} parent=1 // pred_fallthru
      _
    // Predicated region
    $region18: #{tpu_custom_call.1} parent=1 // pred_check
      _
    $region19: #{tpu_custom_call.1} parent=1 // pred_check_branch
      %51 = sbr.rel (0) target = $region21
    $region20: #{tpu_custom_call.1} parent=1 // pred_region
      %52 = dma.done [#allocation6], 256
    $region21: #{tpu_custom_call.1} parent=1 // pred_fallthru
      _
    // Predicated region
    $region22: #{tpu_custom_call.1} parent=1 // pred_check
      _
    $region23: #{tpu_custom_call.1} parent=1 // pred_check_branch
      %54 = sbr.rel (0) target = $region25
    $region24: #{tpu_custom_call.1} parent=1 // pred_region
      %55 = dma.done [#allocation6], 256
    $region25: #{tpu_custom_call.1} parent=1 // pred_fallthru
      _
    %v56 = vld [vmem:[#allocation5] sm:$0xff]
    %v57 = vld [vmem:[#allocation5 + $0x8] sm:$0xff]
    %v58 = vld [vmem:[#allocation7] sm:$0xff]
    %v59 = vld [vmem:[#allocation7 + $0x8] sm:$0xff]
    %v60 = vld [vmem:[#allocation2] sm:$0xff]
    %v61 = vld [vmem:[#allocation2 + $0x8] sm:$0xff]
    %v62 = vlaneseq
    %v63 = vand.u32 %v62, 127
    %vm64 = vcmask 261120
    %v65 = vsel %vm64, %v60, -inf
    %66 = vmax.xlane.f32.xlu0 %v65
    %v67 = vpop.xlane.xlu0 %66
    %v68 = vsel %vm64, %v61, -inf
    %69 = vmax.xlane.f32.xlu0 %v68
    %v70 = vpop.xlane.xlu0 %69
    %v71 = vsub.f32 %v60, %v67
    %v72 = vsub.f32 %v61, %v70
    %v73 = vmul.f32 %v71, 1.442695
    %v74 = vpow.pop %v73
    %v75 = vmul.f32 %v72, 1.442695
    %v76 = vpow.pop %v75
    %v77 = vsel %vm64, %v74, 0.0
    %78 = vadd.xlane.f32.xlu0 %v77
    %v79 = vpop.xlane.xlu0 %78
    %v80 = vsel %vm64, %v76, 0.0
    %81 = vadd.xlane.f32.xlu0 %v80
    %v82 = vpop.xlane.xlu0 %81
    %83 = vset.pattern.permute.xlu0 0
    %84 = vperm.xlu0 %83, %v56
    %v85 = vpop.permute.xlu0 %84
    %86 = vset.pattern.permute.xlu0 0
    %87 = vperm.xlu0 %86, %v57
    %v88 = vpop.permute.xlu0 %87
    %vm89 = vcmp.eq.s32.totalorder %v63, %v85
    %vm90 = vcmp.eq.s32.totalorder %v63, %v88
    %v91 = vsel %vm89, 0.9, 0.0033333334
    %v92 = vsel %vm90, 0.9, 0.0033333334
    %v93 = vmul.f32 %v91, %v60
    %v94 = vmul.f32 %v92, %v61
    %v95 = vsel %vm64, %v93, 0.0
    %96 = vadd.xlane.f32.xlu0 %v95
    %v97 = vpop.xlane.xlu0 %96
    %v98 = vsel %vm64, %v94, 0.0
    %99 = vadd.xlane.f32.xlu0 %v98
    %v100 = vpop.xlane.xlu0 %99
    %v101 = vlog2.pop %v79
    %v102 = vmul.f32 %v101, 0.6931472
    %v103 = vlog2.pop %v82
    %v104 = vmul.f32 %v103, 0.6931472
    %v105 = vadd.f32 %v102, %v67
    %v106 = vadd.f32 %v104, %v70
    %v107 = vsub.f32 %v105, %v97
    %v108 = vsub.f32 %v106, %v100
    %v109 = vmul.f32 %v60, 0.0033333334
    %v110 = vmul.f32 %v61, 0.0033333334
    %v111 = vadd.f32 %v107, %v109
    %v112 = vadd.f32 %v108, %v110
    %vm113 = vcmp.ne.s32.totalorder %v56, 0
    %vm114 = vcmp.ne.s32.totalorder %v57, 0
    %v115 = vsel %vm113, 1, 0
    %v116 = vsel %vm114, 1, 0
    %v117 = vcvt.s32.f32 %v115
    %v118 = vcvt.s32.f32 %v116
    %v119 = vmul.f32 %v111, %v117
    %v120 = vmul.f32 %v112, %v118
    %v121 = vmul.f32 %v119, %v58
    %v122 = vmul.f32 %v120, %v59
    %vm123 = vcmask 7168
    %124 = vst.msk [vmem:[#allocation8] sm:$0xff] %vm123, %v121
    %125 = vst.msk [vmem:[#allocation8 + $0x8] sm:$0xff] %vm123, %v122
    // Predicated region
    $region26: #{tpu_custom_call.1} parent=1 // pred_check
      _
    $region27: #{tpu_custom_call.1} parent=1 // pred_check_branch
      %127 = sbr.rel (0) target = $region29
    $region28: #{tpu_custom_call.1} parent=1 // pred_region
      %s129 = ssub.s32 256, 256
      %130 = vsyncadd [#allocation4], %s129
      %s131 = sshll.u32 [#allocation8], 4
      %s132 = int_to_ptr.vmem [resolvable:$true] %s131
      %137 = dma.vmem_to_hbm [thread:$0]  %s132, 256, %s3, [#allocation4], 128, 128, 8
    $region29: #{tpu_custom_call.1} parent=1 // pred_fallthru
      _
    // Predicated region
    $region30: #{tpu_custom_call.1} parent=1 // pred_check
      _
    $region31: #{tpu_custom_call.1} parent=1 // pred_check_branch
      %139 = sbr.rel (0) target = $region33
    $region32: #{tpu_custom_call.1} parent=1 // pred_region
      %140 = dma.done [#allocation4], 256
    $region33: #{tpu_custom_call.1} parent=1 // pred_fallthru
      _
    %141 = vsyncpa [#allocation3], 1
    %142 = vsyncpa [#allocation6], 1
    %143 = vsyncpa [#allocation4], 1

</llo_original>
